<compile_context>
chip_gen: v6e
topology: v6e:2x2x1
jax: 0.10.0
libtpu: 0.0.40
codegen_flags: <defaults>
</compile_context>

<pallas_src>
import functools

import jax
import jax.numpy as jnp
from jax.experimental import pallas as pl
from jax.experimental.pallas import tpu as pltpu

LANES = 128
DEFAULT_BLOCK_ROWS = 4096  # (4096, 128) f32 = 2 MiB per input block


def _iou_partial_kernel(x_ref, t_ref, o_ref, *, threshold, valid_rows, block_rows):
    """Writes per-block, per-lane partials: o[.,0,:]=intersection, o[.,1,:]=sum(x)+sum(t)."""
    i = pl.program_id(0)

    x = x_ref[...].astype(jnp.float32)
    t = t_ref[...].astype(jnp.float32)
    xb = (x > threshold).astype(jnp.float32)

    # Mask rows past the end of the real data. `valid_rows` / `block_rows` are
    # static, so this whole branch folds away when the grid divides evenly.
    if valid_rows % block_rows != 0:
        row = jax.lax.broadcasted_iota(jnp.int32, xb.shape, 0)
        in_bounds = (i * block_rows + row) < valid_rows
        xb = jnp.where(in_bounds, xb, 0.0)
        t = jnp.where(in_bounds, t, 0.0)

    # Reduce only over the sublane (row) axis here; the 128-lane axis is
    # reduced in the tiny wrapper-side finish, keeping each grid step's output
    # block independent (grid axis can be "parallel") and lane-dense.
    inter = jnp.sum(xb * t, axis=0, keepdims=True)   # (1, 128)
    total = jnp.sum(xb + t, axis=0, keepdims=True)   # (1, 128)
    o_ref[0, 0:1, :] = inter
    o_ref[0, 1:2, :] = total


def iou(inputs, targets, *, smooth=1.0, threshold=0.5, block_rows=DEFAULT_BLOCK_ROWS):
    """Matches PyTorch IoU.forward semantics; returns a scalar f32."""
    x = jnp.ravel(inputs)
    t = jnp.ravel(targets)
    n = x.shape[0]

    # Lane-align only (<=127 pad elements). Zero padding is neutral:
    # 0 > threshold -> 0, and a zero target contributes nothing.
    rem = n % LANES
    if rem:
        pad = LANES - rem
        x = jnp.pad(x, (0, pad))
        t = jnp.pad(t, (0, pad))
    rows = x.shape[0] // LANES

    block_rows = min(block_rows, rows)
    num_blocks = pl.cdiv(rows, block_rows)

    x2 = x.reshape(rows, LANES)
    t2 = t.reshape(rows, LANES)

    kernel = functools.partial(
        _iou_partial_kernel,
        threshold=float(threshold),
        valid_rows=rows,
        block_rows=block_rows,
    )

    partials = pl.pallas_call(
        kernel,
        out_shape=jax.ShapeDtypeStruct((num_blocks, 2, LANES), jnp.float32),
        grid=(num_blocks,),
        in_specs=[
            pl.BlockSpec((block_rows, LANES), lambda i: (i, 0)),
            pl.BlockSpec((block_rows, LANES), lambda i: (i, 0)),
        ],
        out_specs=pl.BlockSpec((1, 2, LANES), lambda i: (i, 0, 0)),
        compiler_params=pltpu.CompilerParams(
            dimension_semantics=("parallel",),
        ),
    )(x2, t2)

    inter = jnp.sum(partials[:, 0, :])
    total = jnp.sum(partials[:, 1, :])
    union = total - inter
    return (inter + smooth) / (union + smooth)


def iou_ref(inputs, targets, *, smooth=1.0, threshold=0.5):
    x = (jnp.ravel(inputs) > threshold).astype(jnp.float32)
    t = jnp.ravel(targets).astype(jnp.float32)
    inter = jnp.sum(x * t)
    union = jnp.sum(x) + jnp.sum(t) - inter
    return (inter + smooth) / (union + smooth)


if __name__ == "__main__":
    key = jax.random.PRNGKey(0)
    k1, k2, k3, k4 = jax.random.split(key, 4)

    # Primary case: NCHW predicted probabilities vs binary mask, f32.
    inputs = jax.random.uniform(k1, (2, 4, 16, 16), dtype=jnp.float32)
    targets = (jax.random.uniform(k2, (2, 4, 16, 16)) > 0.5).astype(jnp.float32)
    out = jax.block_until_ready(iou(inputs, targets))
    ref = iou_ref(inputs, targets)
    assert jnp.allclose(out, ref, rtol=1e-5, atol=1e-5), (out, ref)

    # Ragged case (numel not a multiple of 128), bf16 inputs kept in bf16, and a
    # tiny forced block size to also exercise the in-kernel last-block row mask.
    inputs2 = jax.random.uniform(k3, (3, 5, 7, 11), dtype=jnp.float32).astype(jnp.bfloat16)
    targets2 = (jax.random.uniform(k4, (3, 5, 7, 11)) > 0.5).astype(jnp.bfloat16)
    out2 = jax.block_until_ready(iou(inputs2, targets2, block_rows=8))
    ref2 = iou_ref(inputs2, targets2)
    assert jnp.allclose(out2, ref2, rtol=1e-5, atol=1e-5), (out2, ref2)

    print("KERNEL_OK")
</pallas_src>

<mosaic_0001>
module attributes {stable_mosaic.version = 11 : i64} {
  func.func @_iou_partial_kernel(%arg0: i32, %arg1: memref<16x128xf32, #tpu.memory_space<vmem>>, %arg2: memref<16x128xf32, #tpu.memory_space<vmem>>, %arg3: memref<1x2x128xf32, #tpu.memory_space<vmem>>) attributes {dimension_semantics = [#tpu.dimension_semantics<parallel>], iteration_bounds = array<i64: 1>, scalar_prefetch = 0 : i64, scratch_operands = 0 : i64, tpu.core_type = #tpu.core_type<tc>, window_params = [{transform_indices = @transform_0, window_bounds = array<i64: 16, 128>}, {transform_indices = @transform_1, window_bounds = array<i64: 16, 128>}, {transform_indices = @transform_2, window_bounds = array<i64: 1, 2, 128>}]} {
    %c0 = arith.constant 0 : index
    %c0_0 = arith.constant 0 : index
    %0 = vector.load %arg1[%c0, %c0_0] : memref<16x128xf32, #tpu.memory_space<vmem>>, vector<16x128xf32>
    %c0_1 = arith.constant 0 : index
    %c0_2 = arith.constant 0 : index
    %1 = vector.load %arg2[%c0_1, %c0_2] : memref<16x128xf32, #tpu.memory_space<vmem>>, vector<16x128xf32>
    %cst = arith.constant 5.000000e-01 : f32
    %2 = vector.broadcast %cst : f32 to vector<16x128xf32>
    %3 = arith.cmpf ogt, %0, %2 : vector<16x128xf32>
    %4 = arith.extui %3 : vector<16x128xi1> to vector<16x128xi32>
    %5 = arith.sitofp %4 : vector<16x128xi32> to vector<16x128xf32>
    %6 = arith.mulf %5, %1 : vector<16x128xf32>
    %cst_3 = arith.constant dense<0.000000e+00> : vector<128xf32>
    %7 = vector.multi_reduction <add>, %6, %cst_3 [0] : vector<16x128xf32> to vector<128xf32>
    %8 = vector.shape_cast %7 : vector<128xf32> to vector<1x128xf32>
    %9 = arith.addf %5, %1 : vector<16x128xf32>
    %cst_4 = arith.constant dense<0.000000e+00> : vector<128xf32>
    %10 = vector.multi_reduction <add>, %9, %cst_4 [0] : vector<16x128xf32> to vector<128xf32>
    %11 = vector.shape_cast %10 : vector<128xf32> to vector<1x128xf32>
    %c0_5 = arith.constant 0 : index
    %c0_6 = arith.constant 0 : index
    %c0_7 = arith.constant 0 : index
    %12 = vector.load %arg3[%c0_5, %c0_6, %c0_7] : memref<1x2x128xf32, #tpu.memory_space<vmem>>, vector<1x1x128xf32>
    %13 = vector.shape_cast %12 : vector<1x1x128xf32> to vector<1x128xf32>
    %14 = vector.shape_cast %8 : vector<1x128xf32> to vector<1x1x128xf32>
    tpu.vector_store %arg3[%c0_5, %c0_6, %c0_7], %14 {strides = array<i32>} : memref<1x2x128xf32, #tpu.memory_space<vmem>>, vector<1x1x128xf32>,
    %c0_8 = arith.constant 0 : index
    %c1 = arith.constant 1 : index
    %c0_9 = arith.constant 0 : index
    %15 = vector.load %arg3[%c0_8, %c1, %c0_9] : memref<1x2x128xf32, #tpu.memory_space<vmem>>, vector<1x1x128xf32>
    %16 = vector.shape_cast %15 : vector<1x1x128xf32> to vector<1x128xf32>
    %17 = vector.shape_cast %11 : vector<1x128xf32> to vector<1x1x128xf32>
    tpu.vector_store %arg3[%c0_8, %c1, %c0_9], %17 {strides = array<i32>} : memref<1x2x128xf32, #tpu.memory_space<vmem>>, vector<1x1x128xf32>,
    return
  }
  func.func @transform_0(%arg0: i32) -> (i32, i32) {
    %c0_i32 = arith.constant 0 : i32
    %c0_i32_0 = arith.constant 0 : i32
    return %arg0, %c0_i32 : i32, i32
  }
  func.func @transform_1(%arg0: i32) -> (i32, i32) {
    %c0_i32 = arith.constant 0 : i32
    %c0_i32_0 = arith.constant 0 : i32
    return %arg0, %c0_i32 : i32, i32
  }
  func.func @transform_2(%arg0: i32) -> (i32, i32, i32) {
    %c0_i32 = arith.constant 0 : i32
    %c0_i32_0 = arith.constant 0 : i32
    %c0_i32_1 = arith.constant 0 : i32
    return %arg0, %c0_i32, %c0_i32_0 : i32, i32, i32
  }
}

</mosaic_0001>

<llo_original>
// kernel: tpu_custom_call.1
$region0: #{tpu_custom_call.1}
  #allocation0 [shape = 'u32[]', space=smem, size = 0x4, offset = 0x4, fixed_abs, tag = 'smem constant byte address 0x4 - core index']
  #allocation1 [shape = 'u32[144,128]{1,0:T(1,128)}', space=vmem, size = 0x12000, scoped, tag = 'internal scratch']
  %s0 = inlined_call_operand.hbm [shape: f32[16,128], index: 0, kind: input, shape index: {}]
  %s1 = inlined_call_operand.hbm [shape: f32[16,128], index: 1, kind: input, shape index: {}]
  %s2 = inlined_call_operand.hbm [shape: f32[1,2,128], index: 2, kind: output, shape index: {}]
  %s3 = sld [smem:[#allocation0]]
  $region26: #{tpu_custom_call.1} parent=0
    _
  %s5 = ssub.s32 1, %s3
  %s6 = scalar_select 0, %s5, %s3
  $region1: #{tpu_custom_call.1} parent=0
    #allocation2 [shape = 'u8[8192]{0}', space=vmem, size = 0x2000, scoped, tag = 'input window, operand 0, single buffered']
    #allocation3 [shape = 's32[1]{0}', space=sflag, size = 0x4, scoped, tag = 'scoped memory for tpu_custom_call.1']
    #allocation4 [shape = 's32[1]{0}', space=sflag, size = 0x4, scoped, tag = 'scoped memory for tpu_custom_call.1']
    #allocation5 [shape = 'u8[8192]{0}', space=vmem, size = 0x2000, scoped, tag = 'input window, operand 1, single buffered']
    #allocation6 [shape = 's32[1]{0}', space=sflag, size = 0x4, scoped, tag = 'scoped memory for tpu_custom_call.1']
    #allocation7 [shape = 'u8[1024]{0}', space=vmem, size = 0x400, scoped, tag = 'output window, operand 0, single buffered']
    %7 = vsyncpa [#allocation3], 0
    %8 = vsyncpa [#allocation6], 0
    %9 = vsyncpa [#allocation4], 0
    // Predicated region
    $region2: #{tpu_custom_call.1} parent=1 // pred_check
      _
    $region3: #{tpu_custom_call.1} parent=1 // pred_check_branch
      %11 = sbr.rel (0) target = $region5
    $region4: #{tpu_custom_call.1} parent=1 // pred_region
      %s13 = ssub.s32 256, 256
      %14 = vsyncadd [#allocation3], %s13
      %s15 = sshll.u32 [#allocation2], 4
      %s16 = int_to_ptr.vmem [resolvable:$true] %s15
      %21 = dma.hbm_to_vmem [thread:$0]  %s0, 256, %s16, [#allocation3], 128, 128, 8
    $region5: #{tpu_custom_call.1} parent=1 // pred_fallthru
      _
    // Predicated region
    $region6: #{tpu_custom_call.1} parent=1 // pred_check
      _
    $region7: #{tpu_custom_call.1} parent=1 // pred_check_branch
      %23 = sbr.rel (0) target = $region9
    $region8: #{tpu_custom_call.1} parent=1 // pred_region
      %s25 = ssub.s32 256, 256
      %26 = vsyncadd [#allocation6], %s25
      %s27 = sshll.u32 [#allocation5], 4
      %s28 = int_to_ptr.vmem [resolvable:$true] %s27
      %33 = dma.hbm_to_vmem [thread:$0]  %s1, 256, %s28, [#allocation6], 128, 128, 8
    $region9: #{tpu_custom_call.1} parent=1 // pred_fallthru
      _
    // Predicated region
    $region10: #{tpu_custom_call.1} parent=1 // pred_check
      _
    $region11: #{tpu_custom_call.1} parent=1 // pred_check_branch
      %35 = sbr.rel (0) target = $region13
    $region12: #{tpu_custom_call.1} parent=1 // pred_region
      %36 = dma.done [#allocation3], 256
    $region13: #{tpu_custom_call.1} parent=1 // pred_fallthru
      _
    // Predicated region
    $region14: #{tpu_custom_call.1} parent=1 // pred_check
      _
    $region15: #{tpu_custom_call.1} parent=1 // pred_check_branch
      %38 = sbr.rel (0) target = $region17
    $region16: #{tpu_custom_call.1} parent=1 // pred_region
      %39 = dma.done [#allocation6], 256
    $region17: #{tpu_custom_call.1} parent=1 // pred_fallthru
      _
    %v40 = vld [vmem:[#allocation2] sm:$0xff]
    %v41 = vld [vmem:[#allocation2 + $0x8] sm:$0xff]
    %v42 = vld [vmem:[#allocation5] sm:$0xff]
    %v43 = vld [vmem:[#allocation5 + $0x8] sm:$0xff]
    %vm44 = vcmp.gt.f32.partialorder %v40, 0.5
    %vm45 = vcmp.gt.f32.partialorder %v41, 0.5
    %v46 = vsel %vm44, 1, 0
    %v47 = vsel %vm45, 1, 0
    %v48 = vcvt.s32.f32 %v46
    %v49 = vcvt.s32.f32 %v47
    %v50 = vmul.f32 %v48, %v42
    %v51 = vmul.f32 %v49, %v43
    %v52 = vadd.f32 %v50, %v51
    %v53 = vrot.slane %v52, 4
    %v54 = vadd.f32 %v52, %v53
    %v55 = vrot.slane %v54, 2
    %v56 = vadd.f32 %v54, %v55
    %v57 = vrot.slane %v56, 1
    %v58 = vadd.f32 %v56, %v57
    %v59 = vadd.f32 %v48, %v42
    %v60 = vadd.f32 %v49, %v43
    %v61 = vadd.f32 %v59, %v60
    %v62 = vrot.slane %v61, 4
    %v63 = vadd.f32 %v61, %v62
    %v64 = vrot.slane %v63, 2
    %v65 = vadd.f32 %v63, %v64
    %v66 = vrot.slane %v65, 1
    %v67 = vadd.f32 %v65, %v66
    %68 = vst [vmem:[#allocation7] sm:$0x1] %v58
    %69 = vst [vmem:[#allocation7 + $0x1] sm:$0x1] %v67
    // Predicated region
    $region18: #{tpu_custom_call.1} parent=1 // pred_check
      _
    $region19: #{tpu_custom_call.1} parent=1 // pred_check_branch
      %71 = sbr.rel (0) target = $region21
    $region20: #{tpu_custom_call.1} parent=1 // pred_region
      %s73 = ssub.s32 32, 32
      %74 = vsyncadd [#allocation4], %s73
      %s76 = sshll.u32 [#allocation7], 4
      %s77 = int_to_ptr.vmem [resolvable:$true] %s76
      %79 = dma.vmem_to_hbm [thread:$0]  %s77, 32, %s2, [#allocation4]
    $region21: #{tpu_custom_call.1} parent=1 // pred_fallthru
      _
    // Predicated region
    $region22: #{tpu_custom_call.1} parent=1 // pred_check
      _
    $region23: #{tpu_custom_call.1} parent=1 // pred_check_branch
      %81 = sbr.rel (0) target = $region25
    $region24: #{tpu_custom_call.1} parent=1 // pred_region
      %82 = dma.done [#allocation4], 32
    $region25: #{tpu_custom_call.1} parent=1 // pred_fallthru
      _
    %83 = vsyncpa [#allocation3], 1
    %84 = vsyncpa [#allocation6], 1
    %85 = vsyncpa [#allocation4], 1

</llo_original>
